<compile_context>
chip_gen: v6e
topology: v6e:2x2x1
jax: 0.10.0
libtpu: 0.0.40
codegen_flags: <defaults>
</compile_context>

<pallas_src>
import functools

import jax
import jax.numpy as jnp
from jax.experimental import pallas as pl
from jax.experimental.pallas import tpu as pltpu

EPS = 1e-5  # nn.BatchNorm2d default eps


def _rsn_kernel(p_ref, pool_ref, w1_ref, b1_ref, w2_ref, b2_ref, w3_ref, b3_ref,
                o_ref, *, cn, HW, K, Cout):
    """One grid step handles `cn` batch samples end-to-end (lane-dense layout).

    p_ref   : (1, K, cn*HW)  im2col patches, K = 9*Cin (BN scale + 1/HW folded into w1)
    pool_ref: (cn*HW, cn)    0/1 per-sample selection matrix (pool-as-matmul)
    w1_ref  : (Cout, K)      3x3 conv as one matmul (BN scale + 1/HW folded)
    b1_ref  : (Cout, 1)      folded bias (conv bias + eval-mode BN, * 1/HW)
    w2_ref  : (Cout, Cout)   1x1 conv #2 (scale-folded, transposed)
    b2_ref  : (Cout, 1)
    w3_ref  : (Cout, Cout)   1x1 conv #3 (scale-folded, transposed)
    b3_ref  : (Cout, 1)
    o_ref   : (1, Cout, cn)  sigmoid output for these samples
    """
    M = cn * HW
    patch = p_ref[...].reshape(K, M)                                 # (K, M)

    # --- conv_bn_relu_1: single im2col matmul + bias + ReLU (lane-dense M) ---
    y = jnp.maximum(
        jnp.dot(w1_ref[...], patch, preferred_element_type=jnp.float32)
        + b1_ref[...],
        0.0)                                                         # (Cout, M)

    # --- adaptive_avg_pool2d((1,1)): per-sample lane reduction as a matmul ---
    # (1/HW already folded into w1/b1, so this is a plain masked sum)
    pooled = jnp.dot(y, pool_ref[...],
                     preferred_element_type=jnp.float32)             # (Cout, cn)

    # --- conv_bn_relu_2 (1x1 conv == matmul) ---
    h1 = jnp.maximum(
        jnp.dot(w2_ref[...], pooled, preferred_element_type=jnp.float32)
        + b2_ref[...],
        0.0)                                                         # (Cout, cn)

    # --- conv_bn_relu_3 on (out_1 + out_0) ---
    h2 = h1 + pooled
    h3 = jnp.maximum(
        jnp.dot(w3_ref[...], h2, preferred_element_type=jnp.float32)
        + b3_ref[...],
        0.0)                                                         # (Cout, cn)

    # --- sigmoid ---
    o_ref[...] = jax.nn.sigmoid(h3).reshape(1, Cout, cn).astype(o_ref.dtype)


def _round_up(x, m):
    return (x + m - 1) // m * m


def _pick_num_chunks(N, HW, K):
    """Generation-aware grid sizing.

    v5e/v6e have a single TensorCore: extra grid steps are pure serial overhead,
    so default to 1 chunk. v7x has 2 TensorCores: use >=2 parallel chunks so the
    batch-parallel grid shards across both cores, but cap the per-chunk patch
    block to stay inside v7x's smaller (64 MiB physical / 32 MiB scoped) VMEM.
    """
    kind = ""
    try:
        kind = jax.devices()[0].device_kind.lower()
    except Exception:
        pass
    chunks = 2 if ("v7" in kind and N >= 2) else 1
    per_sample_bytes = _round_up(K, 8) * _round_up(HW, 128) * 4
    budget = 6 * 1024 * 1024  # per (double-buffered) pipeline buffer
    while chunks < N and (-(-N // chunks)) * per_sample_bytes > budget:
        chunks += 1
    return max(1, min(chunks, N))


def rsn_weight_vector_forward(x_nchw, kparams, *, num_chunks=None):
    """x_nchw: (N, Cin, H, W) float32. Returns (N, Cout, 1, 1) like the PyTorch module."""
    x = jnp.transpose(x_nchw, (0, 2, 3, 1)).astype(jnp.float32)     # -> NHWC
    N, H, W, Cin = x.shape
    Cout, K = kparams["w1t"].shape
    HW = H * W

    if num_chunks is None:
        num_chunks = _pick_num_chunks(N, HW, K)
    num_chunks = max(1, min(num_chunks, N))
    cn = -(-N // num_chunks)                  # samples per chunk (ceil)
    Np = cn * num_chunks
    if Np != N:
        x = jnp.pad(x, ((0, Np - N), (0, 0), (0, 0), (0, 0)))

    # im2col in the wrapper; tap order (dy, dx, cin) matches w1t columns.
    xp = jnp.pad(x, ((0, 0), (1, 1), (1, 1), (0, 0)))
    patches = jnp.concatenate(
        [xp[:, dy:dy + H, dx:dx + W, :] for dy in range(3) for dx in range(3)],
        axis=-1)                                                     # (Np, H, W, 9*Cin)
    # Lane-dense layout: K on sublanes, batch*spatial on lanes.
    patches = patches.reshape(num_chunks, cn, HW, K)
    patches = jnp.transpose(patches, (0, 3, 1, 2)).reshape(num_chunks, K, cn * HW)

    # Fold the average-pool 1/HW into conv1 weight & bias (ReLU commutes with
    # a positive scale), so the pool is a plain masked sum.
    inv_hw = jnp.float32(1.0 / HW)
    w1t = kparams["w1t"] * inv_hw
    b1 = kparams["b1"] * inv_hw

    # 0/1 per-sample selection matrix for pool-as-matmul.
    pool_mat = (jnp.arange(cn * HW, dtype=jnp.int32)[:, None] // HW
                == jnp.arange(cn, dtype=jnp.int32)[None, :]).astype(jnp.float32)

    M = cn * HW
    kernel = functools.partial(_rsn_kernel, cn=cn, HW=HW, K=K, Cout=Cout)

    flops = (2 * Np * HW * K * Cout            # im2col conv matmul
             + 2 * Cout * M * cn * num_chunks  # pooling matmul
             + 2 * 2 * Np * Cout * Cout)       # two 1x1 convs
    bytes_accessed = 4 * (num_chunks * K * M + M * cn + Cout * K
                          + 2 * Cout * Cout + 3 * Cout + num_chunks * Cout * cn)

    out = pl.pallas_call(
        kernel,
        out_shape=jax.ShapeDtypeStruct((num_chunks, Cout, cn), jnp.float32),
        grid=(num_chunks,),
        in_specs=[
            pl.BlockSpec((1, K, M), lambda g: (g, 0, 0)),
            pl.BlockSpec((M, cn), lambda g: (0, 0)),
            pl.BlockSpec((Cout, K), lambda g: (0, 0)),
            pl.BlockSpec((Cout, 1), lambda g: (0, 0)),
            pl.BlockSpec((Cout, Cout), lambda g: (0, 0)),
            pl.BlockSpec((Cout, 1), lambda g: (0, 0)),
            pl.BlockSpec((Cout, Cout), lambda g: (0, 0)),
            pl.BlockSpec((Cout, 1), lambda g: (0, 0)),
        ],
        out_specs=pl.BlockSpec((1, Cout, cn), lambda g: (g, 0, 0)),
        compiler_params=pltpu.CompilerParams(
            dimension_semantics=("parallel",)),
        cost_estimate=pl.CostEstimate(
            flops=int(flops),
            transcendentals=int(Np * Cout),
            bytes_accessed=int(bytes_accessed)),
    )(patches, pool_mat, w1t, b1, kparams["w2t"], kparams["b2"],
      kparams["w3t"], kparams["b3"])

    out = jnp.transpose(out, (0, 2, 1)).reshape(Np, Cout)[:N]
    # back to PyTorch NCHW convention: (N, Cout, 1, 1)
    return out[:, :, None, None]


def init_raw_params(key, cin, cout):
    """Deterministic synthetic parameters (conv weights/biases + eval-mode BN stats)."""
    raw = {}
    ks = iter(jax.random.split(key, 24))
    # conv1: 3x3, cin -> cout (HWIO layout)
    raw["w1"] = 0.2 * jax.random.normal(next(ks), (3, 3, cin, cout), jnp.float32)
    raw["b1"] = 0.05 * jax.random.normal(next(ks), (cout,), jnp.float32)
    # conv2 / conv3: 1x1, cout -> cout, stored as (in, out) matmul matrices
    raw["w2"] = 0.2 * jax.random.normal(next(ks), (cout, cout), jnp.float32)
    raw["b2"] = 0.05 * jax.random.normal(next(ks), (cout,), jnp.float32)
    raw["w3"] = 0.2 * jax.random.normal(next(ks), (cout, cout), jnp.float32)
    raw["b3"] = 0.05 * jax.random.normal(next(ks), (cout,), jnp.float32)
    for i in (1, 2, 3):
        raw[f"g{i}"] = 1.0 + 0.1 * jax.random.normal(next(ks), (cout,), jnp.float32)
        raw[f"be{i}"] = 0.05 * jax.random.normal(next(ks), (cout,), jnp.float32)
        raw[f"m{i}"] = 0.05 * jax.random.normal(next(ks), (cout,), jnp.float32)
        raw[f"v{i}"] = 0.5 + jax.random.uniform(next(ks), (cout,), jnp.float32)
    return raw


def fold_params(raw):
    """Fold conv bias + eval-mode BN into transposed, scale-folded weights + column biases."""
    def scale_bias(b, g, be, m, v):
        s = g / jnp.sqrt(v + EPS)
        return s, s * (b - m) + be

    s1, b1 = scale_bias(raw["b1"], raw["g1"], raw["be1"], raw["m1"], raw["v1"])
    s2, b2 = scale_bias(raw["b2"], raw["g2"], raw["be2"], raw["m2"], raw["v2"])
    s3, b3 = scale_bias(raw["b3"], raw["g3"], raw["be3"], raw["m3"], raw["v3"])
    cin, cout = raw["w1"].shape[2], raw["w1"].shape[3]
    w1_mat = raw["w1"].reshape(9 * cin, cout)          # rows ordered (dy, dx, cin)
    return {
        "w1t": (w1_mat * s1[None, :]).T,               # (Cout, 9*Cin)
        "b1": b1[:, None],                             # (Cout, 1)
        "w2t": (raw["w2"] * s2[None, :]).T,            # (Cout, Cout)
        "b2": b2[:, None],
        "w3t": (raw["w3"] * s3[None, :]).T,            # (Cout, Cout)
        "b3": b3[:, None],
    }


def reference_forward(x_nchw, raw):
    """Pure-JAX reference (uses lax.conv) for correctness checking."""
    x = jnp.transpose(x_nchw, (0, 2, 3, 1)).astype(jnp.float32)
    y = jax.lax.conv_general_dilated(
        x, raw["w1"], window_strides=(1, 1), padding="SAME",
        dimension_numbers=("NHWC", "HWIO", "NHWC"))
    y = y + raw["b1"]
    y = raw["g1"] * (y - raw["m1"]) / jnp.sqrt(raw["v1"] + EPS) + raw["be1"]
    y = jnp.maximum(y, 0.0)
    pooled = jnp.mean(y, axis=(1, 2))                       # (N, Cout)
    h1 = pooled @ raw["w2"] + raw["b2"]
    h1 = raw["g2"] * (h1 - raw["m2"]) / jnp.sqrt(raw["v2"] + EPS) + raw["be2"]
    h1 = jnp.maximum(h1, 0.0)
    h2 = h1 + pooled
    h3 = h2 @ raw["w3"] + raw["b3"]
    h3 = raw["g3"] * (h3 - raw["m3"]) / jnp.sqrt(raw["v3"] + EPS) + raw["be3"]
    h3 = jnp.maximum(h3, 0.0)
    out = jax.nn.sigmoid(h3)                                # (N, Cout)
    return out[:, :, None, None]                            # (N, Cout, 1, 1)


if __name__ == "__main__":
    N, Cin, H, W = 2, 4, 16, 16
    Cout = 32

    key = jax.random.PRNGKey(0)
    kx, kp = jax.random.split(key)
    x = jax.random.normal(kx, (N, Cin, H, W), jnp.float32)

    raw = init_raw_params(kp, Cin, Cout)
    kparams = fold_params(raw)

    out = rsn_weight_vector_forward(x, kparams)
    out = jax.block_until_ready(out)

    ref = jax.block_until_ready(reference_forward(x, raw))

    assert out.shape == (N, Cout, 1, 1), out.shape
    assert jnp.max(jnp.abs(out - ref)) < 1e-4, jnp.max(jnp.abs(out - ref))
    print("KERNEL_OK")
</pallas_src>

<mosaic_0001>
module attributes {stable_mosaic.version = 11 : i64} {
  func.func @_rsn_kernel(%arg0: i32, %arg1: memref<1x36x512xf32, #tpu.memory_space<vmem>>, %arg2: memref<512x2xf32, #tpu.memory_space<vmem>>, %arg3: memref<32x36xf32, #tpu.memory_space<vmem>>, %arg4: memref<32x1xf32, #tpu.memory_space<vmem>>, %arg5: memref<32x32xf32, #tpu.memory_space<vmem>>, %arg6: memref<32x1xf32, #tpu.memory_space<vmem>>, %arg7: memref<32x32xf32, #tpu.memory_space<vmem>>, %arg8: memref<32x1xf32, #tpu.memory_space<vmem>>, %arg9: memref<1x32x2xf32, #tpu.memory_space<vmem>>) attributes {dimension_semantics = [#tpu.dimension_semantics<parallel>], iteration_bounds = array<i64: 1>, scalar_prefetch = 0 : i64, scratch_operands = 0 : i64, tpu.core_type = #tpu.core_type<tc>, window_params = [{transform_indices = @transform_0, window_bounds = array<i64: 1, 36, 512>}, {pipeline_mode = #tpu.pipeline_mode<synchronous>, transform_indices = @transform_1, window_bounds = array<i64: 512, 2>}, {pipeline_mode = #tpu.pipeline_mode<synchronous>, transform_indices = @transform_2, window_bounds = array<i64: 32, 36>}, {pipeline_mode = #tpu.pipeline_mode<synchronous>, transform_indices = @transform_3, window_bounds = array<i64: 32, 1>}, {pipeline_mode = #tpu.pipeline_mode<synchronous>, transform_indices = @transform_4, window_bounds = array<i64: 32, 32>}, {pipeline_mode = #tpu.pipeline_mode<synchronous>, transform_indices = @transform_5, window_bounds = array<i64: 32, 1>}, {pipeline_mode = #tpu.pipeline_mode<synchronous>, transform_indices = @transform_6, window_bounds = array<i64: 32, 32>}, {pipeline_mode = #tpu.pipeline_mode<synchronous>, transform_indices = @transform_7, window_bounds = array<i64: 32, 1>}, {transform_indices = @transform_8, window_bounds = array<i64: 1, 32, 2>}]} {
    %c0 = arith.constant 0 : index
    %c0_0 = arith.constant 0 : index
    %c0_1 = arith.constant 0 : index
    %0 = vector.load %arg1[%c0, %c0_0, %c0_1] : memref<1x36x512xf32, #tpu.memory_space<vmem>>, vector<1x36x512xf32>
    %1 = vector.shape_cast %0 : vector<1x36x512xf32> to vector<36x512xf32>
    %c0_2 = arith.constant 0 : index
    %c0_3 = arith.constant 0 : index
    %2 = vector.load %arg3[%c0_2, %c0_3] : memref<32x36xf32, #tpu.memory_space<vmem>>, vector<32x36xf32>
    %cst = arith.constant dense<0.000000e+00> : vector<32x512xf32>
    %3 = tpu.matmul %2, %1, %cst {dimension_numbers = #tpu.dot_dimension_numbers<[1], [0], [0], [1], [0, 0, 1, 1], [], []>} : vector<32x36xf32>, vector<36x512xf32>, vector<32x512xf32> -> vector<32x512xf32>
    %c0_4 = arith.constant 0 : index
    %c0_5 = arith.constant 0 : index
    %4 = vector.load %arg4[%c0_4, %c0_5] : memref<32x1xf32, #tpu.memory_space<vmem>>, vector<32x1xf32>
    %5 = vector.broadcast %4 : vector<32x1xf32> to vector<32x512xf32>
    %6 = arith.addf %3, %5 : vector<32x512xf32>
    %cst_6 = arith.constant 0.000000e+00 : f32
    %7 = vector.broadcast %cst_6 : f32 to vector<32x512xf32>
    %8 = arith.maximumf %6, %7 : vector<32x512xf32>
    %c0_7 = arith.constant 0 : index
    %c0_8 = arith.constant 0 : index
    %9 = vector.load %arg2[%c0_7, %c0_8] : memref<512x2xf32, #tpu.memory_space<vmem>>, vector<512x2xf32>
    %cst_9 = arith.constant dense<0.000000e+00> : vector<32x2xf32>
    %10 = tpu.matmul %8, %9, %cst_9 {dimension_numbers = #tpu.dot_dimension_numbers<[1], [0], [0], [1], [0, 0, 1, 1], [], []>} : vector<32x512xf32>, vector<512x2xf32>, vector<32x2xf32> -> vector<32x2xf32>
    %c0_10 = arith.constant 0 : index
    %c0_11 = arith.constant 0 : index
    %11 = vector.load %arg5[%c0_10, %c0_11] : memref<32x32xf32, #tpu.memory_space<vmem>>, vector<32x32xf32>
    %cst_12 = arith.constant dense<0.000000e+00> : vector<32x2xf32>
    %12 = tpu.matmul %11, %10, %cst_12 {dimension_numbers = #tpu.dot_dimension_numbers<[1], [0], [0], [1], [0, 0, 1, 1], [], []>} : vector<32x32xf32>, vector<32x2xf32>, vector<32x2xf32> -> vector<32x2xf32>
    %c0_13 = arith.constant 0 : index
    %c0_14 = arith.constant 0 : index
    %13 = vector.load %arg6[%c0_13, %c0_14] : memref<32x1xf32, #tpu.memory_space<vmem>>, vector<32x1xf32>
    %14 = vector.broadcast %13 : vector<32x1xf32> to vector<32x2xf32>
    %15 = arith.addf %12, %14 : vector<32x2xf32>
    %cst_15 = arith.constant 0.000000e+00 : f32
    %16 = vector.broadcast %cst_15 : f32 to vector<32x2xf32>
    %17 = arith.maximumf %15, %16 : vector<32x2xf32>
    %18 = arith.addf %17, %10 : vector<32x2xf32>
    %c0_16 = arith.constant 0 : index
    %c0_17 = arith.constant 0 : index
    %19 = vector.load %arg7[%c0_16, %c0_17] : memref<32x32xf32, #tpu.memory_space<vmem>>, vector<32x32xf32>
    %cst_18 = arith.constant dense<0.000000e+00> : vector<32x2xf32>
    %20 = tpu.matmul %19, %18, %cst_18 {dimension_numbers = #tpu.dot_dimension_numbers<[1], [0], [0], [1], [0, 0, 1, 1], [], []>} : vector<32x32xf32>, vector<32x2xf32>, vector<32x2xf32> -> vector<32x2xf32>
    %c0_19 = arith.constant 0 : index
    %c0_20 = arith.constant 0 : index
    %21 = vector.load %arg8[%c0_19, %c0_20] : memref<32x1xf32, #tpu.memory_space<vmem>>, vector<32x1xf32>
    %22 = vector.broadcast %21 : vector<32x1xf32> to vector<32x2xf32>
    %23 = arith.addf %20, %22 : vector<32x2xf32>
    %cst_21 = arith.constant 0.000000e+00 : f32
    %24 = vector.broadcast %cst_21 : f32 to vector<32x2xf32>
    %25 = arith.maximumf %23, %24 : vector<32x2xf32>
    %26 = arith.negf %25 : vector<32x2xf32>
    %27 = math.exp %26 : vector<32x2xf32>
    %cst_22 = arith.constant 1.000000e+00 : f32
    %28 = vector.broadcast %cst_22 : f32 to vector<32x2xf32>
    %29 = arith.addf %28, %27 : vector<32x2xf32>
    %30 = arith.divf %28, %29 : vector<32x2xf32>
    %31 = vector.shape_cast %30 : vector<32x2xf32> to vector<1x32x2xf32>
    %c0_23 = arith.constant 0 : index
    %c0_24 = arith.constant 0 : index
    %c0_25 = arith.constant 0 : index
    %32 = vector.load %arg9[%c0_23, %c0_24, %c0_25] : memref<1x32x2xf32, #tpu.memory_space<vmem>>, vector<1x32x2xf32>
    tpu.vector_store %arg9[%c0_23, %c0_24, %c0_25], %31 {strides = array<i32>} : memref<1x32x2xf32, #tpu.memory_space<vmem>>, vector<1x32x2xf32>,
    return
  }
  func.func @transform_0(%arg0: i32) -> (i32, i32, i32) {
    %c0_i32 = arith.constant 0 : i32
    %c0_i32_0 = arith.constant 0 : i32
    %c0_i32_1 = arith.constant 0 : i32
    return %arg0, %c0_i32, %c0_i32_0 : i32, i32, i32
  }
  func.func @transform_1(%arg0: i32) -> (i32, i32) {
    %c0_i32 = arith.constant 0 : i32
    %c0_i32_0 = arith.constant 0 : i32
    %c0_i32_1 = arith.constant 0 : i32
    return %c0_i32, %c0_i32_0 : i32, i32
  }
  func.func @transform_2(%arg0: i32) -> (i32, i32) {
    %c0_i32 = arith.constant 0 : i32
    %c0_i32_0 = arith.constant 0 : i32
    %c0_i32_1 = arith.constant 0 : i32
    return %c0_i32, %c0_i32_0 : i32, i32
  }
  func.func @transform_3(%arg0: i32) -> (i32, i32) {
    %c0_i32 = arith.constant 0 : i32
    %c0_i32_0 = arith.constant 0 : i32
    %c0_i32_1 = arith.constant 0 : i32
    return %c0_i32, %c0_i32_0 : i32, i32
  }
  func.func @transform_4(%arg0: i32) -> (i32, i32) {
    %c0_i32 = arith.constant 0 : i32
    %c0_i32_0 = arith.constant 0 : i32
    %c0_i32_1 = arith.constant 0 : i32
    return %c0_i32, %c0_i32_0 : i32, i32
  }
  func.func @transform_5(%arg0: i32) -> (i32, i32) {
    %c0_i32 = arith.constant 0 : i32
    %c0_i32_0 = arith.constant 0 : i32
    %c0_i32_1 = arith.constant 0 : i32
    return %c0_i32, %c0_i32_0 : i32, i32
  }
  func.func @transform_6(%arg0: i32) -> (i32, i32) {
    %c0_i32 = arith.constant 0 : i32
    %c0_i32_0 = arith.constant 0 : i32
    %c0_i32_1 = arith.constant 0 : i32
    return %c0_i32, %c0_i32_0 : i32, i32
  }
  func.func @transform_7(%arg0: i32) -> (i32, i32) {
    %c0_i32 = arith.constant 0 : i32
    %c0_i32_0 = arith.constant 0 : i32
    %c0_i32_1 = arith.constant 0 : i32
    return %c0_i32, %c0_i32_0 : i32, i32
  }
  func.func @transform_8(%arg0: i32) -> (i32, i32, i32) {
    %c0_i32 = arith.constant 0 : i32
    %c0_i32_0 = arith.constant 0 : i32
    %c0_i32_1 = arith.constant 0 : i32
    return %arg0, %c0_i32, %c0_i32_0 : i32, i32, i32
  }
}

</mosaic_0001>

<llo_original>
// kernel: tpu_custom_call.1
$region0: #{tpu_custom_call.1}
  #allocation0 [shape = 'u32[]', space=smem, size = 0x4, offset = 0x4, fixed_abs, tag = 'smem constant byte address 0x4 - core index']
  #allocation1 [shape = 'u32[144,128]{1,0:T(1,128)}', space=vmem, size = 0x12000, scoped, tag = 'internal scratch']
  %s0 = inlined_call_operand.vmem [shape: f32[1,36,512], index: 0, kind: input, shape index: {}]
  %s1 = inlined_call_operand.vmem [shape: f32[512,2], index: 1, kind: input, shape index: {}]
  %s2 = inlined_call_operand.vmem [shape: f32[32,36], index: 2, kind: input, shape index: {}]
  %s3 = inlined_call_operand.vmem [shape: f32[32,1], index: 3, kind: input, shape index: {}]
  %s4 = inlined_call_operand.vmem [shape: f32[32,32], index: 4, kind: input, shape index: {}]
  %s5 = inlined_call_operand.vmem [shape: f32[32,1], index: 5, kind: input, shape index: {}]
  %s6 = inlined_call_operand.vmem [shape: f32[32,32], index: 6, kind: input, shape index: {}]
  %s7 = inlined_call_operand.vmem [shape: f32[32,1], index: 7, kind: input, shape index: {}]
  %s8 = inlined_call_operand.vmem [shape: f32[1,32,2], index: 8, kind: output, shape index: {}]
  %s9 = sld [smem:[#allocation0]]
  $region42: #{tpu_custom_call.1} parent=0
    _
  %s11 = ssub.s32 1, %s9
  %s12 = scalar_select 0, %s11, %s9
  // Predicated region
  $region2: #{tpu_custom_call.1} parent=0 // pred_check
    _
  $region3: #{tpu_custom_call.1} parent=0 // pred_check_branch
    %14 = sbr.rel (0) target = $region5
  $region4: #{tpu_custom_call.1} parent=0 // pred_region
    _
  $region5: #{tpu_custom_call.1} parent=0 // pred_fallthru
    _
  // Predicated region
  $region6: #{tpu_custom_call.1} parent=0 // pred_check
    _
  $region7: #{tpu_custom_call.1} parent=0 // pred_check_branch
    %16 = sbr.rel (0) target = $region9
  $region8: #{tpu_custom_call.1} parent=0 // pred_region
    _
  $region9: #{tpu_custom_call.1} parent=0 // pred_fallthru
    _
  // Predicated region
  $region10: #{tpu_custom_call.1} parent=0 // pred_check
    _
  $region11: #{tpu_custom_call.1} parent=0 // pred_check_branch
    %18 = sbr.rel (0) target = $region13
  $region12: #{tpu_custom_call.1} parent=0 // pred_region
    _
  $region13: #{tpu_custom_call.1} parent=0 // pred_fallthru
    _
  // Predicated region
  $region14: #{tpu_custom_call.1} parent=0 // pred_check
    _
  $region15: #{tpu_custom_call.1} parent=0 // pred_check_branch
    %20 = sbr.rel (0) target = $region17
  $region16: #{tpu_custom_call.1} parent=0 // pred_region
    _
  $region17: #{tpu_custom_call.1} parent=0 // pred_fallthru
    _
  // Predicated region
  $region18: #{tpu_custom_call.1} parent=0 // pred_check
    _
  $region19: #{tpu_custom_call.1} parent=0 // pred_check_branch
    %22 = sbr.rel (0) target = $region21
  $region20: #{tpu_custom_call.1} parent=0 // pred_region
    _
  $region21: #{tpu_custom_call.1} parent=0 // pred_fallthru
    _
  // Predicated region
  $region22: #{tpu_custom_call.1} parent=0 // pred_check
    _
  $region23: #{tpu_custom_call.1} parent=0 // pred_check_branch
    %24 = sbr.rel (0) target = $region25
  $region24: #{tpu_custom_call.1} parent=0 // pred_region
    _
  $region25: #{tpu_custom_call.1} parent=0 // pred_fallthru
    _
  // Predicated region
  $region26: #{tpu_custom_call.1} parent=0 // pred_check
    _
  $region27: #{tpu_custom_call.1} parent=0 // pred_check_branch
    %26 = sbr.rel (0) target = $region29
  $region28: #{tpu_custom_call.1} parent=0 // pred_region
    _
  $region29: #{tpu_custom_call.1} parent=0 // pred_fallthru
    _
  // Predicated region
  $region30: #{tpu_custom_call.1} parent=0 // pred_check
    _
  $region31: #{tpu_custom_call.1} parent=0 // pred_check_branch
    %28 = sbr.rel (0) target = $region33
  $region32: #{tpu_custom_call.1} parent=0 // pred_region
    _
  $region33: #{tpu_custom_call.1} parent=0 // pred_fallthru
    _
  %v29 = vld [vmem:[%s0] sm:$0xff]
  %v30 = vld [vmem:[%s0 + $0x8] sm:$0xff]
  %v31 = vld [vmem:[%s0 + $0x10] sm:$0xff]
  %v32 = vld [vmem:[%s0 + $0x18] sm:$0xff]
  %v33 = vld [vmem:[%s0 + $0x20] sm:$0xff]
  %v34 = vld [vmem:[%s0 + $0x28] sm:$0xff]
  %v35 = vld [vmem:[%s0 + $0x30] sm:$0xff]
  %v36 = vld [vmem:[%s0 + $0x38] sm:$0xff]
  %v37 = vld [vmem:[%s0 + $0x40] sm:$0xff]
  %v38 = vld [vmem:[%s0 + $0x48] sm:$0xff]
  %v39 = vld [vmem:[%s0 + $0x50] sm:$0xff]
  %v40 = vld [vmem:[%s0 + $0x58] sm:$0xff]
  %v41 = vld [vmem:[%s0 + $0x60] sm:$0xff]
  %v42 = vld [vmem:[%s0 + $0x68] sm:$0xff]
  %v43 = vld [vmem:[%s0 + $0x70] sm:$0xff]
  %v44 = vld [vmem:[%s0 + $0x78] sm:$0xff]
  %v45 = vld [vmem:[%s0 + $0x80] sm:$0xf]
  %v46 = vld [vmem:[%s0 + $0x88] sm:$0xf]
  %v47 = vld [vmem:[%s0 + $0x90] sm:$0xf]
  %v48 = vld [vmem:[%s0 + $0x98] sm:$0xf]
  %v49 = vld [vmem:[%s2] sm:$0xff]
  %v50 = vld [vmem:[%s2 + $0x8] sm:$0xff]
  %v51 = vld [vmem:[%s2 + $0x10] sm:$0xff]
  %v52 = vld [vmem:[%s2 + $0x18] sm:$0xff]
  %v53 = vld [vmem:[%s3] sm:$0xff]
  %v54 = vld [vmem:[%s3 + $0x8] sm:$0xff]
  %v55 = vld [vmem:[%s3 + $0x10] sm:$0xff]
  %v56 = vld [vmem:[%s3 + $0x18] sm:$0xff]
  %58 = vset.pattern.permute.xlu0 0
  %59 = vperm.xlu0 %58, %v53
  %v60 = vpop.permute.xlu0 %59
  %63 = vset.pattern.permute.xlu0 0
  %64 = vperm.xlu0 %63, %v54
  %v65 = vpop.permute.xlu0 %64
  %68 = vset.pattern.permute.xlu0 0
  %69 = vperm.xlu0 %68, %v55
  %v70 = vpop.permute.xlu0 %69
  %73 = vset.pattern.permute.xlu0 0
  %74 = vperm.xlu0 %73, %v56
  %v75 = vpop.permute.xlu0 %74
  %vm77 = vcmask 293888
  %v79 = vsel %vm77, %v49, 0
  %v82 = vsel %vm77, %v50, 0
  %v85 = vsel %vm77, %v51, 0
  %v88 = vsel %vm77, %v52, 0
  %vm90 = vcmask 1043456
  %v92 = vsel %vm90, %v45, 0
  %v95 = vsel %vm90, %v46, 0
  %v98 = vsel %vm90, %v47, 0
  %v101 = vsel %vm90, %v48, 0
  %103 = vmatprep.subr.mxu0 0.0
  %104 = vmatpush1.msra.mxu0 0.0
  %105 = vmatprep.subr.mxu0 0.0
  %106 = vmatpush1.msra.mxu0 0.0
  %107 = vmatprep.subr.mxu0 0.0
  %108 = vmatpush1.msra.mxu0 0.0
  %109 = vmatprep.subr.mxu0 0.0
  %110 = vmatpush1.msra.mxu0 0.0
  %111 = vmatprep.subr.mxu0 0.0
  %112 = vmatpush1.msra.mxu0 0.0
  %113 = vmatprep.subr.mxu0 0.0
  %114 = vmatpush1.msra.mxu0 0.0
  %115 = vmatprep.subr.mxu0 0.0
  %116 = vmatpush1.msra.mxu0 0.0
  %117 = vmatprep.subr.mxu0 0.0
  %118 = vmatpush1.msra.mxu0 0.0
  %119 = vmatprep.subr.mxu0 0.0
  %120 = vmatpush1.msra.mxu0 0.0
  %121 = vmatprep.subr.mxu0 0.0
  %122 = vmatpush1.msra.mxu0 0.0
  %123 = vmatprep.subr.mxu0 0.0
  %124 = vmatpush1.msra.mxu0 0.0
  %125 = vmatprep.subr.mxu0 %v95
  %126 = vmatpush1.msra.mxu0 %v92
  %127 = vmatprep.subr.mxu0 %v42
  %128 = vmatpush1.msra.mxu0 %v41
  %129 = vmatprep.subr.mxu0 %v38
  %130 = vmatpush1.msra.mxu0 %v37
  %131 = vmatprep.subr.mxu0 %v34
  %132 = vmatpush1.msra.mxu0 %v33
  %133 = vmatprep.subr.mxu0 %v30
  %134 = vmatpush1.msra.mxu0 %v29
  %135 = vmatprep.subr.mxu0 0.0
  %136 = vmatpush2.msra.mxu0 0.0
  %137 = vmatprep.subr.mxu0 0.0
  %138 = vmatpush2.msra.mxu0 0.0
  %139 = vmatprep.subr.mxu0 0.0
  %140 = vmatpush2.msra.mxu0 0.0
  %141 = vmatprep.subr.mxu0 0.0
  %142 = vmatpush2.msra.mxu0 0.0
  %143 = vmatprep.subr.mxu0 0.0
  %144 = vmatpush2.msra.mxu0 0.0
  %145 = vmatprep.subr.mxu0 0.0
  %146 = vmatpush2.msra.mxu0 0.0
  %147 = vmatprep.subr.mxu0 0.0
  %148 = vmatpush2.msra.mxu0 0.0
  %149 = vmatprep.subr.mxu0 0.0
  %150 = vmatpush2.msra.mxu0 0.0
  %151 = vmatprep.subr.mxu0 0.0
  %152 = vmatpush2.msra.mxu0 0.0
  %153 = vmatprep.subr.mxu0 0.0
  %154 = vmatpush2.msra.mxu0 0.0
  %155 = vmatprep.subr.mxu0 0.0
  %156 = vmatpush2.msra.mxu0 0.0
  %157 = vmatprep.subr.mxu0 0.0
  %158 = vmatpush2.msra.mxu0 0.0
  %159 = vmatprep.subr.mxu0 0.0
  %160 = vmatpush2.msra.mxu0 0.0
  %161 = vmatprep.subr.mxu0 0.0
  %162 = vmatpush2.msra.mxu0 0.0
  %163 = vmatprep.subr.mxu0 0.0
  %164 = vmatpush2.msra.mxu0 0.0
  %165 = vmatprep.subr.mxu0 0.0
  %166 = vmatpush2.msra.mxu0 0.0
  %167 = vmatprep.mubr.f32.mxu0 0.0
  %168 = vmatmul.mubr.f32.gmra.mxu0 %v79
  %v169 = vpop.f32.mrf.mxu0
  %v170 = vadd.f32 %v60, %v169
  %v171 = vpop.f32.mrf.mxu0
  %v172 = vadd.f32 %v60, %v171
  %173 = vmatprep.mubr.f32.mxu0 0.0
  %174 = vmatmul.mubr.f32.gmra.mxu0 %v82
  %v175 = vpop.f32.mrf.mxu0
  %v176 = vadd.f32 %v65, %v175
  %v177 = vpop.f32.mrf.mxu0
  %v178 = vadd.f32 %v65, %v177
  %179 = vmatprep.mubr.f32.mxu0 0.0
  %180 = vmatmul.mubr.f32.gmra.mxu0 %v85
  %v181 = vpop.f32.mrf.mxu0
  %v182 = vadd.f32 %v70, %v181
  %v183 = vpop.f32.mrf.mxu0
  %v184 = vadd.f32 %v70, %v183
  %185 = vmatprep.mubr.f32.mxu0 0.0
  %186 = vmatmul.mubr.f32.gmra.mxu0 %v88
  %v187 = vpop.f32.mrf.mxu0
  %v188 = vadd.f32 %v75, %v187
  %v189 = vpop.f32.mrf.mxu0
  %v190 = vadd.f32 %v75, %v189
  %191 = vdwg.mxu0
  %192 = vmatprep.subr.mxu0 0.0
  %193 = vmatpush1.msra.mxu0 0.0
  %194 = vmatprep.subr.mxu0 0.0
  %195 = vmatpush1.msra.mxu0 0.0
  %196 = vmatprep.subr.mxu0 0.0
  %197 = vmatpush1.msra.mxu0 0.0
  %198 = vmatprep.subr.mxu0 0.0
  %199 = vmatpush1.msra.mxu0 0.0
  %200 = vmatprep.subr.mxu0 0.0
  %201 = vmatpush1.msra.mxu0 0.0
  %202 = vmatprep.subr.mxu0 0.0
  %203 = vmatpush1.msra.mxu0 0.0
  %204 = vmatprep.subr.mxu0 0.0
  %205 = vmatpush1.msra.mxu0 0.0
  %206 = vmatprep.subr.mxu0 0.0
  %207 = vmatpush1.msra.mxu0 0.0
  %208 = vmatprep.subr.mxu0 0.0
  %209 = vmatpush1.msra.mxu0 0.0
  %210 = vmatprep.subr.mxu0 0.0
  %211 = vmatpush1.msra.mxu0 0.0
  %212 = vmatprep.subr.mxu0 0.0
  %213 = vmatpush1.msra.mxu0 0.0
  %214 = vmatprep.subr.mxu0 %v101
  %215 = vmatpush1.msra.mxu0 %v98
  %216 = vmatprep.subr.mxu0 %v44
  %217 = vmatpush1.msra.mxu0 %v43
  %218 = vmatprep.subr.mxu0 %v40
  %219 = vmatpush1.msra.mxu0 %v39
  %220 = vmatprep.subr.mxu0 %v36
  %221 = vmatpush1.msra.mxu0 %v35
  %222 = vmatprep.subr.mxu0 %v32
  %223 = vmatpush1.msra.mxu0 %v31
  %224 = vmatprep.subr.mxu0 0.0
  %225 = vmatpush2.msra.mxu0 0.0
  %226 = vmatprep.subr.mxu0 0.0
  %227 = vmatpush2.msra.mxu0 0.0
  %228 = vmatprep.subr.mxu0 0.0
  %229 = vmatpush2.msra.mxu0 0.0
  %230 = vmatprep.subr.mxu0 0.0
  %231 = vmatpush2.msra.mxu0 0.0
  %232 = vmatprep.subr.mxu0 0.0
  %233 = vmatpush2.msra.mxu0 0.0
  %234 = vmatprep.subr.mxu0 0.0
  %235 = vmatpush2.msra.mxu0 0.0
  %236 = vmatprep.subr.mxu0 0.0
  %237 = vmatpush2.msra.mxu0 0.0
  %238 = vmatprep.subr.mxu0 0.0
  %239 = vmatpush2.msra.mxu0 0.0
  %240 = vmatprep.subr.mxu0 0.0
  %241 = vmatpush2.msra.mxu0 0.0
  %242 = vmatprep.subr.mxu0 0.0
  %243 = vmatpush2.msra.mxu0 0.0
  %244 = vmatprep.subr.mxu0 0.0
  %245 = vmatpush2.msra.mxu0 0.0
  %246 = vmatprep.subr.mxu0 0.0
  %247 = vmatpush2.msra.mxu0 0.0
  %248 = vmatprep.subr.mxu0 0.0
  %249 = vmatpush2.msra.mxu0 0.0
  %250 = vmatprep.subr.mxu0 0.0
  %251 = vmatpush2.msra.mxu0 0.0
  %252 = vmatprep.subr.mxu0 0.0
  %253 = vmatpush2.msra.mxu0 0.0
  %254 = vmatprep.subr.mxu0 0.0
  %255 = vmatpush2.msra.mxu0 0.0
  %256 = vmatprep.mubr.f32.mxu0 0.0
  %257 = vmatmul.mubr.f32.gmra.mxu0 %v79
  %v258 = vpop.f32.mrf.mxu0
  %v259 = vadd.f32 %v60, %v258
  %v260 = vpop.f32.mrf.mxu0
  %v261 = vadd.f32 %v60, %v260
  %262 = vmatprep.mubr.f32.mxu0 0.0
  %263 = vmatmul.mubr.f32.gmra.mxu0 %v82
  %v264 = vpop.f32.mrf.mxu0
  %v265 = vadd.f32 %v65, %v264
  %v266 = vpop.f32.mrf.mxu0
  %v267 = vadd.f32 %v65, %v266
  %268 = vmatprep.mubr.f32.mxu0 0.0
  %269 = vmatmul.mubr.f32.gmra.mxu0 %v85
  %v270 = vpop.f32.mrf.mxu0
  %v271 = vadd.f32 %v70, %v270
  %v272 = vpop.f32.mrf.mxu0
  %v273 = vadd.f32 %v70, %v272
  %274 = vmatprep.mubr.f32.mxu0 0.0
  %275 = vmatmul.mubr.f32.gmra.mxu0 %v88
  %v276 = vpop.f32.mrf.mxu0
  %v277 = vadd.f32 %v75, %v276
  %v278 = vpop.f32.mrf.mxu0
  %v279 = vadd.f32 %v75, %v278
  %280 = vdwg.mxu0
  %v281 = vmax.f32 %v170, 0.0
  %v282 = vmax.f32 %v172, 0.0
  %v283 = vmax.f32 %v259, 0.0
  %v284 = vmax.f32 %v261, 0.0
  %v285 = vmax.f32 %v176, 0.0
  %v286 = vmax.f32 %v178, 0.0
  %v287 = vmax.f32 %v265, 0.0
  %v288 = vmax.f32 %v267, 0.0
  %v289 = vmax.f32 %v182, 0.0
  %v290 = vmax.f32 %v184, 0.0
  %v291 = vmax.f32 %v271, 0.0
  %v292 = vmax.f32 %v273, 0.0
  %v293 = vmax.f32 %v188, 0.0
  %v294 = vmax.f32 %v190, 0.0
  %v295 = vmax.f32 %v277, 0.0
  %v296 = vmax.f32 %v279, 0.0
  %v297 = vld [vmem:[%s1] sm:$0xff]
  %v298 = vld [vmem:[%s1 + $0x8] sm:$0xff]
  %v299 = vld [vmem:[%s1 + $0x10] sm:$0xff]
  %v300 = vld [vmem:[%s1 + $0x18] sm:$0xff]
  %v301 = vld [vmem:[%s1 + $0x20] sm:$0xff]
  %v302 = vld [vmem:[%s1 + $0x28] sm:$0xff]
  %v303 = vld [vmem:[%s1 + $0x30] sm:$0xff]
  %v304 = vld [vmem:[%s1 + $0x38] sm:$0xff]
  %v305 = vld [vmem:[%s1 + $0x40] sm:$0xff]
  %v306 = vld [vmem:[%s1 + $0x48] sm:$0xff]
  %v307 = vld [vmem:[%s1 + $0x50] sm:$0xff]
  %v308 = vld [vmem:[%s1 + $0x58] sm:$0xff]
  %v309 = vld [vmem:[%s1 + $0x60] sm:$0xff]
  %v310 = vld [vmem:[%s1 + $0x68] sm:$0xff]
  %v311 = vld [vmem:[%s1 + $0x70] sm:$0xff]
  %v312 = vld [vmem:[%s1 + $0x78] sm:$0xff]
  %v313 = vld [vmem:[%s1 + $0x80] sm:$0xff]
  %v314 = vld [vmem:[%s1 + $0x88] sm:$0xff]
  %v315 = vld [vmem:[%s1 + $0x90] sm:$0xff]
  %v316 = vld [vmem:[%s1 + $0x98] sm:$0xff]
  %v317 = vld [vmem:[%s1 + $0xa0] sm:$0xff]
  %v318 = vld [vmem:[%s1 + $0xa8] sm:$0xff]
  %v319 = vld [vmem:[%s1 + $0xb0] sm:$0xff]
  %v320 = vld [vmem:[%s1 + $0xb8] sm:$0xff]
  %v321 = vld [vmem:[%s1 + $0xc0] sm:$0xff]
  %v322 = vld [vmem:[%s1 + $0xc8] sm:$0xff]
  %v323 = vld [vmem:[%s1 + $0xd0] sm:$0xff]
  %v324 = vld [vmem:[%s1 + $0xd8] sm:$0xff]
  %v325 = vld [vmem:[%s1 + $0xe0] sm:$0xff]
  %v326 = vld [vmem:[%s1 + $0xe8] sm:$0xff]
  %v327 = vld [vmem:[%s1 + $0xf0] sm:$0xff]
  %v328 = vld [vmem:[%s1 + $0xf8] sm:$0xff]
  %v329 = vld [vmem:[%s1 + $0x100] sm:$0xff]
  %v330 = vld [vmem:[%s1 + $0x108] sm:$0xff]
  %v331 = vld [vmem:[%s1 + $0x110] sm:$0xff]
  %v332 = vld [vmem:[%s1 + $0x118] sm:$0xff]
  %v333 = vld [vmem:[%s1 + $0x120] sm:$0xff]
  %v334 = vld [vmem:[%s1 + $0x128] sm:$0xff]
  %v335 = vld [vmem:[%s1 + $0x130] sm:$0xff]
  %v336 = vld [vmem:[%s1 + $0x138] sm:$0xff]
  %v337 = vld [vmem:[%s1 + $0x140] sm:$0xff]
  %v338 = vld [vmem:[%s1 + $0x148] sm:$0xff]
  %v339 = vld [vmem:[%s1 + $0x150] sm:$0xff]
  %v340 = vld [vmem:[%s1 + $0x158] sm:$0xff]
  %v341 = vld [vmem:[%s1 + $0x160] sm:$0xff]
  %v342 = vld [vmem:[%s1 + $0x168] sm:$0xff]
  %v343 = vld [vmem:[%s1 + $0x170] sm:$0xff]
  %v344 = vld [vmem:[%s1 + $0x178] sm:$0xff]
  %v345 = vld [vmem:[%s1 + $0x180] sm:$0xff]
  %v346 = vld [vmem:[%s1 + $0x188] sm:$0xff]
  %v347 = vld [vmem:[%s1 + $0x190] sm:$0xff]
  %v348 = vld [vmem:[%s1 + $0x198] sm:$0xff]
  %v349 = vld [vmem:[%s1 + $0x1a0] sm:$0xff]
  %v350 = vld [vmem:[%s1 + $0x1a8] sm:$0xff]
  %v351 = vld [vmem:[%s1 + $0x1b0] sm:$0xff]
  %v352 = vld [vmem:[%s1 + $0x1b8] sm:$0xff]
  %v353 = vld [vmem:[%s1 + $0x1c0] sm:$0xff]
  %v354 = vld [vmem:[%s1 + $0x1c8] sm:$0xff]
  %v355 = vld [vmem:[%s1 + $0x1d0] sm:$0xff]
  %v356 = vld [vmem:[%s1 + $0x1d8] sm:$0xff]
  %v357 = vld [vmem:[%s1 + $0x1e0] sm:$0xff]
  %v358 = vld [vmem:[%s1 + $0x1e8] sm:$0xff]
  %v359 = vld [vmem:[%s1 + $0x1f0] sm:$0xff]
  %v360 = vld [vmem:[%s1 + $0x1f8] sm:$0xff]
  %361 = vmatprep.subr.mxu0 0.0
  %362 = vmatpush1.msra.mxu0 %v312
  %363 = vmatprep.subr.mxu0 0.0
  %364 = vmatpush1.msra.mxu0 %v311
  %365 = vmatprep.subr.mxu0 0.0
  %366 = vmatpush1.msra.mxu0 %v310
  %367 = vmatprep.subr.mxu0 0.0
  %368 = vmatpush1.msra.mxu0 %v309
  %369 = vmatprep.subr.mxu0 0.0
  %370 = vmatpush1.msra.mxu0 %v308
  %371 = vmatprep.subr.mxu0 0.0
  %372 = vmatpush1.msra.mxu0 %v307
  %373 = vmatprep.subr.mxu0 0.0
  %374 = vmatpush1.msra.mxu0 %v306
  %375 = vmatprep.subr.mxu0 0.0
  %376 = vmatpush1.msra.mxu0 %v305
  %377 = vmatprep.subr.mxu0 0.0
  %378 = vmatpush1.msra.mxu0 %v304
  %379 = vmatprep.subr.mxu0 0.0
  %380 = vmatpush1.msra.mxu0 %v303
  %381 = vmatprep.subr.mxu0 0.0
  %382 = vmatpush1.msra.mxu0 %v302
  %383 = vmatprep.subr.mxu0 0.0
  %384 = vmatpush1.msra.mxu0 %v301
  %385 = vmatprep.subr.mxu0 0.0
  %386 = vmatpush1.msra.mxu0 %v300
  %387 = vmatprep.subr.mxu0 0.0
  %388 = vmatpush1.msra.mxu0 %v299
  %389 = vmatprep.subr.mxu0 0.0
  %390 = vmatpush1.msra.mxu0 %v298
  %391 = vmatprep.subr.mxu0 0.0
  %392 = vmatpush1.msra.mxu0 %v297
  %393 = vmatprep.subr.mxu0 0.0
  %394 = vmatpush2.msra.mxu0 %v328
  %395 = vmatprep.subr.mxu0 0.0
  %396 = vmatpush2.msra.mxu0 %v327
  %397 = vmatprep.subr.mxu0 0.0
  %398 = vmatpush2.msra.mxu0 %v326
  %399 = vmatprep.subr.mxu0 0.0
  %400 = vmatpush2.msra.mxu0 %v325
  %401 = vmatprep.subr.mxu0 0.0
  %402 = vmatpush2.msra.mxu0 %v324
  %403 = vmatprep.subr.mxu0 0.0
  %404 = vmatpush2.msra.mxu0 %v323
  %405 = vmatprep.subr.mxu0 0.0
  %406 = vmatpush2.msra.mxu0 %v322
  %407 = vmatprep.subr.mxu0 0.0
  %408 = vmatpush2.msra.mxu0 %v321
  %409 = vmatprep.subr.mxu0 0.0
  %410 = vmatpush2.msra.mxu0 %v320
  %411 = vmatprep.subr.mxu0 0.0
  %412 = vmatpush2.msra.mxu0 %v319
  %413 = vmatprep.subr.mxu0 0.0
  %414 = vmatpush2.msra.mxu0 %v318
  %415 = vmatprep.subr.mxu0 0.0
  %416 = vmatpush2.msra.mxu0 %v317
  %417 = vmatprep.subr.mxu0 0.0
  %418 = vmatpush2.msra.mxu0 %v316
  %419 = vmatprep.subr.mxu0 0.0
  %420 = vmatpush2.msra.mxu0 %v315
  %421 = vmatprep.subr.mxu0 0.0
  %422 = vmatpush2.msra.mxu0 %v314
  %423 = vmatprep.subr.mxu0 0.0
  %424 = vmatpush2.msra.mxu0 %v313
  %425 = vmatprep.mubr.f32.mxu0 %v282
  %426 = vmatmul.mubr.f32.gmra.mxu0 %v281
  %v427 = vpop.f32.mrf.mxu0
  %v428 = vadd.f32 0.0, %v427
  %v429 = vpop.f32.mrf.mxu0
  %430 = vmatprep.mubr.f32.mxu0 %v286
  %431 = vmatmul.mubr.f32.gmra.mxu0 %v285
  %v432 = vpop.f32.mrf.mxu0
  %v433 = vadd.f32 0.0, %v432
  %v434 = vpop.f32.mrf.mxu0
  %435 = vmatprep.mubr.f32.mxu0 %v290
  %436 = vmatmul.mubr.f32.gmra.mxu0 %v289
  %v437 = vpop.f32.mrf.mxu0
  %v438 = vadd.f32 0.0, %v437
  %v439 = vpop.f32.mrf.mxu0
  %440 = vmatprep.mubr.f32.mxu0 %v294
  %441 = vmatmul.mubr.f32.gmra.mxu0 %v293
  %v442 = vpop.f32.mrf.mxu0
  %v443 = vadd.f32 0.0, %v442
  %v444 = vpop.f32.mrf.mxu0
  %445 = vdwg.mxu0
  %446 = vmatprep.subr.mxu0 0.0
  %447 = vmatpush1.msra.mxu0 %v344
  %448 = vmatprep.subr.mxu0 0.0
  %449 = vmatpush1.msra.mxu0 %v343
  %450 = vmatprep.subr.mxu0 0.0
  %451 = vmatpush1.msra.mxu0 %v342
  %452 = vmatprep.subr.mxu0 0.0
  %453 = vmatpush1.msra.mxu0 %v341
  %454 = vmatprep.subr.mxu0 0.0
  %455 = vmatpush1.msra.mxu0 %v340
  %456 = vmatprep.subr.mxu0 0.0
  %457 = vmatpush1.msra.mxu0 %v339
  %458 = vmatprep.subr.mxu0 0.0
  %459 = vmatpush1.msra.mxu0 %v338
  %460 = vmatprep.subr.mxu0 0.0
  %461 = vmatpush1.msra.mxu0 %v337
  %462 = vmatprep.subr.mxu0 0.0
  %463 = vmatpush1.msra.mxu0 %v336
  %464 = vmatprep.subr.mxu0 0.0
  %465 = vmatpush1.msra.mxu0 %v335
  %466 = vmatprep.subr.mxu0 0.0
  %467 = vmatpush1.msra.mxu0 %v334
  %468 = vmatprep.subr.mxu0 0.0
  %469 = vmatpush1.msra.mxu0 %v333
  %470 = vmatprep.subr.mxu0 0.0
  %471 = vmatpush1.msra.mxu0 %v332
  %472 = vmatprep.subr.mxu0 0.0
  %473 = vmatpush1.msra.mxu0 %v331
  %474 = vmatprep.subr.mxu0 0.0
  %475 = vmatpush1.msra.mxu0 %v330
  %476 = vmatprep.subr.mxu0 0.0
  %477 = vmatpush1.msra.mxu0 %v329
  %478 = vmatprep.subr.mxu0 0.0
  %479 = vmatpush2.msra.mxu0 %v360
  %480 = vmatprep.subr.mxu0 0.0
  %481 = vmatpush2.msra.mxu0 %v359
  %482 = vmatprep.subr.mxu0 0.0
  %483 = vmatpush2.msra.mxu0 %v358
  %484 = vmatprep.subr.mxu0 0.0
  %485 = vmatpush2.msra.mxu0 %v357
  %486 = vmatprep.subr.mxu0 0.0
  %487 = vmatpush2.msra.mxu0 %v356
  %488 = vmatprep.subr.mxu0 0.0
  %489 = vmatpush2.msra.mxu0 %v355
  %490 = vmatprep.subr.mxu0 0.0
  %491 = vmatpush2.msra.mxu0 %v354
  %492 = vmatprep.subr.mxu0 0.0
  %493 = vmatpush2.msra.mxu0 %v353
  %494 = vmatprep.subr.mxu0 0.0
  %495 = vmatpush2.msra.mxu0 %v352
  %496 = vmatprep.subr.mxu0 0.0
  %497 = vmatpush2.msra.mxu0 %v351
  %498 = vmatprep.subr.mxu0 0.0
  %499 = vmatpush2.msra.mxu0 %v350
  %500 = vmatprep.subr.mxu0 0.0
  %501 = vmatpush2.msra.mxu0 %v349
  %502 = vmatprep.subr.mxu0 0.0
  %503 = vmatpush2.msra.mxu0 %v348
  %504 = vmatprep.subr.mxu0 0.0
  %505 = vmatpush2.msra.mxu0 %v347
  %506 = vmatprep.subr.mxu0 0.0
  %507 = vmatpush2.msra.mxu0 %v346
  %508 = vmatprep.subr.mxu0 0.0
  %509 = vmatpush2.msra.mxu0 %v345
  %510 = vmatprep.mubr.f32.mxu0 %v284
  %511 = vmatmul.mubr.f32.gmra.mxu0 %v283
  %v512 = vpop.f32.mrf.mxu0
  %v513 = vadd.f32 %v428, %v512
  %v514 = vpop.f32.mrf.mxu0
  %515 = vmatprep.mubr.f32.mxu0 %v288
  %516 = vmatmul.mubr.f32.gmra.mxu0 %v287
  %v517 = vpop.f32.mrf.mxu0
  %v518 = vadd.f32 %v433, %v517
  %v519 = vpop.f32.mrf.mxu0
  %520 = vmatprep.mubr.f32.mxu0 %v292
  %521 = vmatmul.mubr.f32.gmra.mxu0 %v291
  %v522 = vpop.f32.mrf.mxu0
  %v523 = vadd.f32 %v438, %v522
  %v524 = vpop.f32.mrf.mxu0
  %525 = vmatprep.mubr.f32.mxu0 %v296
  %526 = vmatmul.mubr.f32.gmra.mxu0 %v295
  %v527 = vpop.f32.mrf.mxu0
  %v528 = vadd.f32 %v443, %v527
  %v529 = vpop.f32.mrf.mxu0
  %530 = vdwg.mxu0
  %v531 = vld [vmem:[%s4] sm:$0xff]
  %v532 = vld [vmem:[%s4 + $0x8] sm:$0xff]
  %v533 = vld [vmem:[%s4 + $0x10] sm:$0xff]
  %v534 = vld [vmem:[%s4 + $0x18] sm:$0xff]
  %v535 = vld [vmem:[%s5] sm:$0xff]
  %v536 = vld [vmem:[%s5 + $0x8] sm:$0xff]
  %v537 = vld [vmem:[%s5 + $0x10] sm:$0xff]
  %v538 = vld [vmem:[%s5 + $0x18] sm:$0xff]
  %540 = vset.pattern.permute.xlu0 0
  %541 = vperm.xlu0 %540, %v535
  %v542 = vpop.permute.xlu0 %541
  %545 = vset.pattern.permute.xlu0 0
  %546 = vperm.xlu0 %545, %v536
  %v547 = vpop.permute.xlu0 %546
  %550 = vset.pattern.permute.xlu0 0
  %551 = vperm.xlu0 %550, %v537
  %v552 = vpop.permute.xlu0 %551
  %555 = vset.pattern.permute.xlu0 0
  %556 = vperm.xlu0 %555, %v538
  %v557 = vpop.permute.xlu0 %556
  %vm559 = vcmask 261120
  %v561 = vsel %vm559, %v531, 0
  %v564 = vsel %vm559, %v532, 0
  %v567 = vsel %vm559, %v533, 0
  %v570 = vsel %vm559, %v534, 0
  %572 = vmatprep.subr.mxu0 0.0
  %573 = vmatpush1.msra.mxu0 0.0
  %574 = vmatprep.subr.mxu0 0.0
  %575 = vmatpush1.msra.mxu0 0.0
  %576 = vmatprep.subr.mxu0 0.0
  %577 = vmatpush1.msra.mxu0 0.0
  %578 = vmatprep.subr.mxu0 0.0
  %579 = vmatpush1.msra.mxu0 0.0
  %580 = vmatprep.subr.mxu0 0.0
  %581 = vmatpush1.msra.mxu0 0.0
  %582 = vmatprep.subr.mxu0 0.0
  %583 = vmatpush1.msra.mxu0 0.0
  %584 = vmatprep.subr.mxu0 0.0
  %585 = vmatpush1.msra.mxu0 0.0
  %586 = vmatprep.subr.mxu0 0.0
  %587 = vmatpush1.msra.mxu0 0.0
  %588 = vmatprep.subr.mxu0 0.0
  %589 = vmatpush1.msra.mxu0 0.0
  %590 = vmatprep.subr.mxu0 0.0
  %591 = vmatpush1.msra.mxu0 0.0
  %592 = vmatprep.subr.mxu0 0.0
  %593 = vmatpush1.msra.mxu0 0.0
  %594 = vmatprep.subr.mxu0 0.0
  %595 = vmatpush1.msra.mxu0 0.0
  %596 = vmatprep.subr.mxu0 0.0
  %597 = vmatpush1.msra.mxu0 %v528
  %598 = vmatprep.subr.mxu0 0.0
  %599 = vmatpush1.msra.mxu0 %v523
  %600 = vmatprep.subr.mxu0 0.0
  %601 = vmatpush1.msra.mxu0 %v518
  %602 = vmatprep.subr.mxu0 0.0
  %603 = vmatpush1.msra.mxu0 %v513
  %604 = vmatprep.subr.mxu0 0.0
  %605 = vmatpush2.msra.mxu0 0.0
  %606 = vmatprep.subr.mxu0 0.0
  %607 = vmatpush2.msra.mxu0 0.0
  %608 = vmatprep.subr.mxu0 0.0
  %609 = vmatpush2.msra.mxu0 0.0
  %610 = vmatprep.subr.mxu0 0.0
  %611 = vmatpush2.msra.mxu0 0.0
  %612 = vmatprep.subr.mxu0 0.0
  %613 = vmatpush2.msra.mxu0 0.0
  %614 = vmatprep.subr.mxu0 0.0
  %615 = vmatpush2.msra.mxu0 0.0
  %616 = vmatprep.subr.mxu0 0.0
  %617 = vmatpush2.msra.mxu0 0.0
  %618 = vmatprep.subr.mxu0 0.0
  %619 = vmatpush2.msra.mxu0 0.0
  %620 = vmatprep.subr.mxu0 0.0
  %621 = vmatpush2.msra.mxu0 0.0
  %622 = vmatprep.subr.mxu0 0.0
  %623 = vmatpush2.msra.mxu0 0.0
  %624 = vmatprep.subr.mxu0 0.0
  %625 = vmatpush2.msra.mxu0 0.0
  %626 = vmatprep.subr.mxu0 0.0
  %627 = vmatpush2.msra.mxu0 0.0
  %628 = vmatprep.subr.mxu0 0.0
  %629 = vmatpush2.msra.mxu0 0.0
  %630 = vmatprep.subr.mxu0 0.0
  %631 = vmatpush2.msra.mxu0 0.0
  %632 = vmatprep.subr.mxu0 0.0
  %633 = vmatpush2.msra.mxu0 0.0
  %634 = vmatprep.subr.mxu0 0.0
  %635 = vmatpush2.msra.mxu0 0.0
  %636 = vmatprep.mubr.f32.mxu0 0.0
  %637 = vmatmul.mubr.f32.gmra.mxu0 %v561
  %v638 = vpop.f32.mrf.mxu0
  %v639 = vadd.f32 %v542, %v638
  %v640 = vpop.f32.mrf.mxu0
  %641 = vmatprep.mubr.f32.mxu0 0.0
  %642 = vmatmul.mubr.f32.gmra.mxu0 %v564
  %v643 = vpop.f32.mrf.mxu0
  %v644 = vadd.f32 %v547, %v643
  %v645 = vpop.f32.mrf.mxu0
  %646 = vmatprep.mubr.f32.mxu0 0.0
  %647 = vmatmul.mubr.f32.gmra.mxu0 %v567
  %v648 = vpop.f32.mrf.mxu0
  %v649 = vadd.f32 %v552, %v648
  %v650 = vpop.f32.mrf.mxu0
  %651 = vmatprep.mubr.f32.mxu0 0.0
  %652 = vmatmul.mubr.f32.gmra.mxu0 %v570
  %v653 = vpop.f32.mrf.mxu0
  %v654 = vadd.f32 %v557, %v653
  %v655 = vpop.f32.mrf.mxu0
  %656 = vdwg.mxu0
  %v657 = vmax.f32 %v639, 0.0
  %v658 = vmax.f32 %v644, 0.0
  %v659 = vmax.f32 %v649, 0.0
  %v660 = vmax.f32 %v654, 0.0
  %v661 = vadd.f32 %v657, %v513
  %v662 = vadd.f32 %v658, %v518
  %v663 = vadd.f32 %v659, %v523
  %v664 = vadd.f32 %v660, %v528
  %v665 = vld [vmem:[%s6] sm:$0xff]
  %v666 = vld [vmem:[%s6 + $0x8] sm:$0xff]
  %v667 = vld [vmem:[%s6 + $0x10] sm:$0xff]
  %v668 = vld [vmem:[%s6 + $0x18] sm:$0xff]
  %v669 = vld [vmem:[%s7] sm:$0xff]
  %v670 = vld [vmem:[%s7 + $0x8] sm:$0xff]
  %v671 = vld [vmem:[%s7 + $0x10] sm:$0xff]
  %v672 = vld [vmem:[%s7 + $0x18] sm:$0xff]
  %674 = vset.pattern.permute.xlu0 0
  %675 = vperm.xlu0 %674, %v669
  %v676 = vpop.permute.xlu0 %675
  %679 = vset.pattern.permute.xlu0 0
  %680 = vperm.xlu0 %679, %v670
  %v681 = vpop.permute.xlu0 %680
  %684 = vset.pattern.permute.xlu0 0
  %685 = vperm.xlu0 %684, %v671
  %v686 = vpop.permute.xlu0 %685
  %689 = vset.pattern.permute.xlu0 0
  %690 = vperm.xlu0 %689, %v672
  %v691 = vpop.permute.xlu0 %690
  %v694 = vsel %vm559, %v665, 0
  %v697 = vsel %vm559, %v666, 0
  %v700 = vsel %vm559, %v667, 0
  %v703 = vsel %vm559, %v668, 0
  %705 = vmatprep.subr.mxu0 0.0
  %706 = vmatpush1.msra.mxu0 0.0
  %707 = vmatprep.subr.mxu0 0.0
  %708 = vmatpush1.msra.mxu0 0.0
  %709 = vmatprep.subr.mxu0 0.0
  %710 = vmatpush1.msra.mxu0 0.0
  %711 = vmatprep.subr.mxu0 0.0
  %712 = vmatpush1.msra.mxu0 0.0
  %713 = vmatprep.subr.mxu0 0.0
  %714 = vmatpush1.msra.mxu0 0.0
  %715 = vmatprep.subr.mxu0 0.0
  %716 = vmatpush1.msra.mxu0 0.0
  %717 = vmatprep.subr.mxu0 0.0
  %718 = vmatpush1.msra.mxu0 0.0
  %719 = vmatprep.subr.mxu0 0.0
  %720 = vmatpush1.msra.mxu0 0.0
  %721 = vmatprep.subr.mxu0 0.0
  %722 = vmatpush1.msra.mxu0 0.0
  %723 = vmatprep.subr.mxu0 0.0
  %724 = vmatpush1.msra.mxu0 0.0
  %725 = vmatprep.subr.mxu0 0.0
  %726 = vmatpush1.msra.mxu0 0.0
  %727 = vmatprep.subr.mxu0 0.0
  %728 = vmatpush1.msra.mxu0 0.0
  %729 = vmatprep.subr.mxu0 0.0
  %730 = vmatpush1.msra.mxu0 %v664
  %731 = vmatprep.subr.mxu0 0.0
  %732 = vmatpush1.msra.mxu0 %v663
  %733 = vmatprep.subr.mxu0 0.0
  %734 = vmatpush1.msra.mxu0 %v662
  %735 = vmatprep.subr.mxu0 0.0
  %736 = vmatpush1.msra.mxu0 %v661
  %737 = vmatprep.subr.mxu0 0.0
  %738 = vmatpush2.msra.mxu0 0.0
  %739 = vmatprep.subr.mxu0 0.0
  %740 = vmatpush2.msra.mxu0 0.0
  %741 = vmatprep.subr.mxu0 0.0
  %742 = vmatpush2.msra.mxu0 0.0
  %743 = vmatprep.subr.mxu0 0.0
  %744 = vmatpush2.msra.mxu0 0.0
  %745 = vmatprep.subr.mxu0 0.0
  %746 = vmatpush2.msra.mxu0 0.0
  %747 = vmatprep.subr.mxu0 0.0
  %748 = vmatpush2.msra.mxu0 0.0
  %749 = vmatprep.subr.mxu0 0.0
  %750 = vmatpush2.msra.mxu0 0.0
  %751 = vmatprep.subr.mxu0 0.0
  %752 = vmatpush2.msra.mxu0 0.0
  %753 = vmatprep.subr.mxu0 0.0
  %754 = vmatpush2.msra.mxu0 0.0
  %755 = vmatprep.subr.mxu0 0.0
  %756 = vmatpush2.msra.mxu0 0.0
  %757 = vmatprep.subr.mxu0 0.0
  %758 = vmatpush2.msra.mxu0 0.0
  %759 = vmatprep.subr.mxu0 0.0
  %760 = vmatpush2.msra.mxu0 0.0
  %761 = vmatprep.subr.mxu0 0.0
  %762 = vmatpush2.msra.mxu0 0.0
  %763 = vmatprep.subr.mxu0 0.0
  %764 = vmatpush2.msra.mxu0 0.0
  %765 = vmatprep.subr.mxu0 0.0
  %766 = vmatpush2.msra.mxu0 0.0
  %767 = vmatprep.subr.mxu0 0.0
  %768 = vmatpush2.msra.mxu0 0.0
  %769 = vmatprep.mubr.f32.mxu0 0.0
  %770 = vmatmul.mubr.f32.gmra.mxu0 %v694
  %v771 = vpop.f32.mrf.mxu0
  %v772 = vadd.f32 %v676, %v771
  %v773 = vpop.f32.mrf.mxu0
  %774 = vmatprep.mubr.f32.mxu0 0.0
  %775 = vmatmul.mubr.f32.gmra.mxu0 %v697
  %v776 = vpop.f32.mrf.mxu0
  %v777 = vadd.f32 %v681, %v776
  %v778 = vpop.f32.mrf.mxu0
  %779 = vmatprep.mubr.f32.mxu0 0.0
  %780 = vmatmul.mubr.f32.gmra.mxu0 %v700
  %v781 = vpop.f32.mrf.mxu0
  %v782 = vadd.f32 %v686, %v781
  %v783 = vpop.f32.mrf.mxu0
  %784 = vmatprep.mubr.f32.mxu0 0.0
  %785 = vmatmul.mubr.f32.gmra.mxu0 %v703
  %v786 = vpop.f32.mrf.mxu0
  %v787 = vadd.f32 %v691, %v786
  %v788 = vpop.f32.mrf.mxu0
  %789 = vdwg.mxu0
  %v790 = vmax.f32 %v772, 0.0
  %v791 = vmax.f32 %v777, 0.0
  %v792 = vmax.f32 %v782, 0.0
  %v793 = vmax.f32 %v787, 0.0
  %v794 = vxor.u32 %v790, 2147483648
  %v795 = vxor.u32 %v791, 2147483648
  %v796 = vxor.u32 %v792, 2147483648
  %v797 = vxor.u32 %v793, 2147483648
  %v798 = vmul.f32 %v794, 1.442695
  %v799 = vpow.pop %v798
  %v800 = vmul.f32 %v795, 1.442695
  %v801 = vpow.pop %v800
  %v802 = vmul.f32 %v796, 1.442695
  %v803 = vpow.pop %v802
  %v804 = vmul.f32 %v797, 1.442695
  %v805 = vpow.pop %v804
  %v806 = vadd.f32 %v799, 1.0
  %v807 = vadd.f32 %v801, 1.0
  %v808 = vadd.f32 %v803, 1.0
  %v809 = vadd.f32 %v805, 1.0
  %v810 = vrcp.pop %v806
  %v811 = vmul.f32 1.0, %v810
  %v812 = vrcp.pop %v807
  %v813 = vmul.f32 1.0, %v812
  %v814 = vrcp.pop %v808
  %v815 = vmul.f32 1.0, %v814
  %v816 = vrcp.pop %v809
  %v817 = vmul.f32 1.0, %v816
  %vm818 = vcmask 15360
  %819 = vst.msk [vmem:[%s8] sm:$0xff] %vm818, %v811
  %820 = vst.msk [vmem:[%s8 + $0x8] sm:$0xff] %vm818, %v813
  %821 = vst.msk [vmem:[%s8 + $0x10] sm:$0xff] %vm818, %v815
  %822 = vst.msk [vmem:[%s8 + $0x18] sm:$0xff] %vm818, %v817
  // Predicated region
  $region34: #{tpu_custom_call.1} parent=0 // pred_check
    _
  $region35: #{tpu_custom_call.1} parent=0 // pred_check_branch
    %824 = sbr.rel (0) target = $region37
  $region36: #{tpu_custom_call.1} parent=0 // pred_region
    _
  $region37: #{tpu_custom_call.1} parent=0 // pred_fallthru
    _
  // Predicated region
  $region38: #{tpu_custom_call.1} parent=0 // pred_check
    _
  $region39: #{tpu_custom_call.1} parent=0 // pred_check_branch
    %826 = sbr.rel (0) target = $region41
  $region40: #{tpu_custom_call.1} parent=0 // pred_region
    _
  $region41: #{tpu_custom_call.1} parent=0 // pred_fallthru
    _

</llo_original>
